<compile_context>
chip_gen: v7x
topology: tpu7x:2x2x1
jax: 0.10.0
libtpu: 0.0.40
codegen_flags: <defaults>
</compile_context>

<pallas_src>
import jax
import jax.numpy as jnp
from jax import lax
from jax.experimental import pallas as pl
from jax.experimental.pallas import tpu as pltpu


# Contract the last dim of both operands: A (m,k) x B (n,k) -> (m,n)  ("NT").
_NT_DIM_NUMBERS = (((1,), (1,)), ((), ()))


def _value_kernel(x_ref, w1_ref, b1_ref, w2_ref, b2_ref, w3_ref, b3_ref, o_ref):
    cdt = w1_ref.dtype  # MXU compute dtype for the two big layers (bf16 by default)

    x = x_ref[...].astype(cdt)                                     # (tb, in_dim)

    # Layer 1: bf16 MXU matmul with f32 accumulation; bias/ReLU in f32 (VPU).
    h1 = jnp.dot(x, w1_ref[...], preferred_element_type=jnp.float32) + b1_ref[...]
    h1 = jnp.maximum(h1, 0.0)                                      # (tb, hidden) f32

    # Layer 2.
    h2 = jnp.dot(h1.astype(cdt), w2_ref[...],
                 preferred_element_type=jnp.float32) + b2_ref[...]
    h2 = jnp.maximum(h2, 0.0)                                      # (tb, hidden) f32

    # Layer 3 (hidden -> 1) in f32 as an NT matmul: (1,hidden) x (tb,hidden)^T
    # -> (1, tb).  The result is batch-on-lanes, so the store below is a
    # lane-dense unmasked vst instead of a (tb,1) column of masked stores.
    v = lax.dot_general(w3_ref[...], h2, _NT_DIM_NUMBERS,
                        preferred_element_type=jnp.float32) + b3_ref[...]
    o_ref[...] = v.astype(o_ref.dtype)                             # (1, tb)


def _choose_batch_tile(B, tile_b):
    """Pick the batch tile.

    - B <= 256: one (possibly ragged) tile; work is tiny anyway.
    - B  > 256: tiles are multiples of 256 (whole 256x256 MXU tiles on v6e/v7x,
      128-lane multiples for the lane-dense output), capped at tile_b, and sized
      so the grid has >= 2 steps (both v7x TensorCores get work).
    """
    if B <= 256:
        return B
    tile_b = max(256, (tile_b // 256) * 256)
    half = -(-B // 2)                       # cdiv(B, 2)
    tb = ((half + 255) // 256) * 256        # round up to a multiple of 256
    return min(tile_b, tb)


def value_forward(state, params, *, tile_b=2048):
    """state: (B, input_dim); params from init_value_params. Returns (B, 1) f32."""
    w1, b1, w2, b2, w3, b3 = params
    B, in_dim = state.shape
    hidden = w1.shape[1]

    tb = _choose_batch_tile(B, tile_b)
    grid = (pl.cdiv(B, tb),)                # ragged last block handled by Pallas masking

    flops = 2 * B * (in_dim * hidden + hidden * hidden + hidden)
    bytes_accessed = int(
        B * in_dim * state.dtype.itemsize                    # read state
        + B * 4                                              # write values
        + sum(int(p.size) * p.dtype.itemsize for p in params)
    )

    out = pl.pallas_call(
        _value_kernel,
        out_shape=jax.ShapeDtypeStruct((1, B), jnp.float32),   # lane-dense output row
        grid=grid,
        in_specs=[
            pl.BlockSpec((tb, in_dim), lambda i: (i, 0)),       # state tile
            pl.BlockSpec((in_dim, hidden), lambda i: (0, 0)),   # W1 (grid-resident)
            pl.BlockSpec((1, hidden), lambda i: (0, 0)),        # b1
            pl.BlockSpec((hidden, hidden), lambda i: (0, 0)),   # W2 (grid-resident)
            pl.BlockSpec((1, hidden), lambda i: (0, 0)),        # b2
            pl.BlockSpec((1, hidden), lambda i: (0, 0)),        # W3 row
            pl.BlockSpec((1, 1), lambda i: (0, 0)),             # b3
        ],
        out_specs=pl.BlockSpec((1, tb), lambda i: (0, i)),
        compiler_params=pltpu.CompilerParams(
            dimension_semantics=("parallel",),   # shard batch axis across TCs (v7x)
        ),
        cost_estimate=pl.CostEstimate(
            flops=flops, transcendentals=0, bytes_accessed=bytes_accessed),
    )(state, w1, b1, w2, b2, w3, b3)

    # (1, B) -> (B, 1): same row-major element order, so this reshape is free.
    return out.reshape(B, 1)


def init_value_params(key, input_dim, hidden_dim=256, init_weight_range=0.003,
                      weight_dtype=jnp.bfloat16):
    """Mirrors the PyTorch module: weights ~ U(-r, r) (the module only re-inits
    weights); biases keep nn.Linear's default U(-1/sqrt(fan_in), 1/sqrt(fan_in)).
    W1/W2 are stored (in, out) in `weight_dtype` (bf16 -> full MXU rate, half the
    weight DMA bytes); W3 is an f32 (1, hidden) row for the f32 final layer;
    biases stay f32."""
    ks = jax.random.split(key, 6)

    def w(kk, fan_in, fan_out, dtype):
        return jax.random.uniform(kk, (fan_in, fan_out), jnp.float32,
                                  minval=-init_weight_range,
                                  maxval=init_weight_range).astype(dtype)

    def b(kk, fan_in, fan_out):
        bound = 1.0 / jnp.sqrt(jnp.asarray(fan_in, jnp.float32))
        return jax.random.uniform(kk, (1, fan_out), jnp.float32,
                                  minval=-bound, maxval=bound)

    w1 = w(ks[0], input_dim, hidden_dim, weight_dtype)
    b1 = b(ks[1], input_dim, hidden_dim)
    w2 = w(ks[2], hidden_dim, hidden_dim, weight_dtype)
    b2 = b(ks[3], hidden_dim, hidden_dim)
    w3 = w(ks[4], hidden_dim, 1, jnp.float32).T          # (1, hidden) row
    b3 = b(ks[5], hidden_dim, 1)                         # (1, 1)
    return (w1, b1, w2, b2, w3, b3)


def _reference_forward(state, params):
    """Pure-JAX reference with the same bf16-in / f32-accumulate numerics.
    Note: intentionally quantized like the kernel (bf16 weights), so ~1e-3-level
    drift vs a true f32 network is accepted (fine for RL value targets)."""
    w1, b1, w2, b2, w3, b3 = params
    cdt = w1.dtype
    x = state.astype(cdt)
    h1 = jnp.maximum(jnp.dot(x, w1, preferred_element_type=jnp.float32) + b1, 0.0)
    h2 = jnp.maximum(jnp.dot(h1.astype(cdt), w2,
                             preferred_element_type=jnp.float32) + b2, 0.0)
    return jnp.sum(h2 * w3, axis=-1, keepdims=True) + b3


if __name__ == "__main__":
    # Small shapes consistent with LunarLander SAC: state dim 8.
    batch, input_dim, hidden_dim = 2, 8, 128

    key = jax.random.PRNGKey(0)
    k_state, k_params, k_big = jax.random.split(key, 3)

    state = jax.random.normal(k_state, (batch, input_dim), jnp.float32)
    params = init_value_params(k_params, input_dim, hidden_dim)

    v = jax.block_until_ready(value_forward(state, params))
    v_ref = _reference_forward(state, params)
    assert v.shape == (batch, 1), v.shape
    assert jnp.allclose(v, v_ref, atol=1e-4, rtol=1e-3), (v, v_ref)

    # Exercise the multi-step pipelined path: B=500 -> tb=256, grid=2 with a
    # ragged (masked) last block; no wrapper-side pad or slice involved.
    big_state = jax.random.normal(k_big, (500, input_dim), jnp.float32)
    v_big = jax.block_until_ready(value_forward(big_state, params))
    v_big_ref = _reference_forward(big_state, params)
    assert v_big.shape == (500, 1), v_big.shape
    assert jnp.allclose(v_big, v_big_ref, atol=1e-4, rtol=1e-3)

    print("KERNEL_OK")
</pallas_src>

<mosaic_0001>
module attributes {stable_mosaic.version = 11 : i64} {
  func.func @_value_kernel(%arg0: i32, %arg1: memref<2x8xf32, #tpu.memory_space<vmem>>, %arg2: memref<8x128xbf16, #tpu.memory_space<vmem>>, %arg3: memref<1x128xf32, #tpu.memory_space<vmem>>, %arg4: memref<128x128xbf16, #tpu.memory_space<vmem>>, %arg5: memref<1x128xf32, #tpu.memory_space<vmem>>, %arg6: memref<1x128xf32, #tpu.memory_space<vmem>>, %arg7: memref<1x1xf32, #tpu.memory_space<vmem>>, %arg8: memref<1x2xf32, #tpu.memory_space<vmem>>) attributes {dimension_semantics = [#tpu.dimension_semantics<parallel>], iteration_bounds = array<i64: 1>, scalar_prefetch = 0 : i64, scratch_operands = 0 : i64, tpu.core_type = #tpu.core_type<tc>, window_params = [{transform_indices = @transform_0, window_bounds = array<i64: 2, 8>}, {pipeline_mode = #tpu.pipeline_mode<synchronous>, transform_indices = @transform_1, window_bounds = array<i64: 8, 128>}, {pipeline_mode = #tpu.pipeline_mode<synchronous>, transform_indices = @transform_2, window_bounds = array<i64: 1, 128>}, {pipeline_mode = #tpu.pipeline_mode<synchronous>, transform_indices = @transform_3, window_bounds = array<i64: 128, 128>}, {pipeline_mode = #tpu.pipeline_mode<synchronous>, transform_indices = @transform_4, window_bounds = array<i64: 1, 128>}, {pipeline_mode = #tpu.pipeline_mode<synchronous>, transform_indices = @transform_5, window_bounds = array<i64: 1, 128>}, {pipeline_mode = #tpu.pipeline_mode<synchronous>, transform_indices = @transform_6, window_bounds = array<i64: 1, 1>}, {transform_indices = @transform_7, window_bounds = array<i64: 1, 2>}]} {
    %c0 = arith.constant 0 : index
    %c0_0 = arith.constant 0 : index
    %0 = vector.load %arg1[%c0, %c0_0] : memref<2x8xf32, #tpu.memory_space<vmem>>, vector<2x8xf32>
    %1 = arith.truncf %0 : vector<2x8xf32> to vector<2x8xbf16>
    %c0_1 = arith.constant 0 : index
    %c0_2 = arith.constant 0 : index
    %2 = vector.load %arg2[%c0_1, %c0_2] : memref<8x128xbf16, #tpu.memory_space<vmem>>, vector<8x128xbf16>
    %cst = arith.constant dense<0.000000e+00> : vector<2x128xf32>
    %3 = tpu.matmul %1, %2, %cst {dimension_numbers = #tpu.dot_dimension_numbers<[1], [0], [0], [1], [0, 0, 1, 1], [], []>} : vector<2x8xbf16>, vector<8x128xbf16>, vector<2x128xf32> -> vector<2x128xf32>
    %c0_3 = arith.constant 0 : index
    %c0_4 = arith.constant 0 : index
    %4 = vector.load %arg3[%c0_3, %c0_4] : memref<1x128xf32, #tpu.memory_space<vmem>>, vector<1x128xf32>
    %5 = vector.broadcast %4 : vector<1x128xf32> to vector<2x128xf32>
    %6 = arith.addf %3, %5 : vector<2x128xf32>
    %cst_5 = arith.constant 0.000000e+00 : f32
    %7 = vector.broadcast %cst_5 : f32 to vector<2x128xf32>
    %8 = arith.maximumf %6, %7 : vector<2x128xf32>
    %9 = arith.truncf %8 : vector<2x128xf32> to vector<2x128xbf16>
    %c0_6 = arith.constant 0 : index
    %c0_7 = arith.constant 0 : index
    %10 = vector.load %arg4[%c0_6, %c0_7] : memref<128x128xbf16, #tpu.memory_space<vmem>>, vector<128x128xbf16>
    %cst_8 = arith.constant dense<0.000000e+00> : vector<2x128xf32>
    %11 = tpu.matmul %9, %10, %cst_8 {dimension_numbers = #tpu.dot_dimension_numbers<[1], [0], [0], [1], [0, 0, 1, 1], [], []>} : vector<2x128xbf16>, vector<128x128xbf16>, vector<2x128xf32> -> vector<2x128xf32>
    %c0_9 = arith.constant 0 : index
    %c0_10 = arith.constant 0 : index
    %12 = vector.load %arg5[%c0_9, %c0_10] : memref<1x128xf32, #tpu.memory_space<vmem>>, vector<1x128xf32>
    %13 = vector.broadcast %12 : vector<1x128xf32> to vector<2x128xf32>
    %14 = arith.addf %11, %13 : vector<2x128xf32>
    %cst_11 = arith.constant 0.000000e+00 : f32
    %15 = vector.broadcast %cst_11 : f32 to vector<2x128xf32>
    %16 = arith.maximumf %14, %15 : vector<2x128xf32>
    %c0_12 = arith.constant 0 : index
    %c0_13 = arith.constant 0 : index
    %17 = vector.load %arg6[%c0_12, %c0_13] : memref<1x128xf32, #tpu.memory_space<vmem>>, vector<1x128xf32>
    %cst_14 = arith.constant dense<0.000000e+00> : vector<1x2xf32>
    %18 = tpu.matmul %17, %16, %cst_14 {dimension_numbers = #tpu.dot_dimension_numbers<[1], [1], [0], [0], [0, 0, 1, 0], [], []>} : vector<1x128xf32>, vector<2x128xf32>, vector<1x2xf32> -> vector<1x2xf32>
    %c0_15 = arith.constant 0 : index
    %c0_16 = arith.constant 0 : index
    %19 = vector.load %arg7[%c0_15, %c0_16] : memref<1x1xf32, #tpu.memory_space<vmem>>, vector<1x1xf32>
    %20 = vector.broadcast %19 : vector<1x1xf32> to vector<1x2xf32>
    %21 = arith.addf %18, %20 : vector<1x2xf32>
    %c0_17 = arith.constant 0 : index
    %c0_18 = arith.constant 0 : index
    %22 = vector.load %arg8[%c0_17, %c0_18] : memref<1x2xf32, #tpu.memory_space<vmem>>, vector<1x2xf32>
    tpu.vector_store %arg8[%c0_17, %c0_18], %21 {strides = array<i32>} : memref<1x2xf32, #tpu.memory_space<vmem>>, vector<1x2xf32>,
    return
  }
  func.func @transform_0(%arg0: i32) -> (i32, i32) {
    %c0_i32 = arith.constant 0 : i32
    %c0_i32_0 = arith.constant 0 : i32
    return %arg0, %c0_i32 : i32, i32
  }
  func.func @transform_1(%arg0: i32) -> (i32, i32) {
    %c0_i32 = arith.constant 0 : i32
    %c0_i32_0 = arith.constant 0 : i32
    %c0_i32_1 = arith.constant 0 : i32
    return %c0_i32, %c0_i32_0 : i32, i32
  }
  func.func @transform_2(%arg0: i32) -> (i32, i32) {
    %c0_i32 = arith.constant 0 : i32
    %c0_i32_0 = arith.constant 0 : i32
    %c0_i32_1 = arith.constant 0 : i32
    return %c0_i32, %c0_i32_0 : i32, i32
  }
  func.func @transform_3(%arg0: i32) -> (i32, i32) {
    %c0_i32 = arith.constant 0 : i32
    %c0_i32_0 = arith.constant 0 : i32
    %c0_i32_1 = arith.constant 0 : i32
    return %c0_i32, %c0_i32_0 : i32, i32
  }
  func.func @transform_4(%arg0: i32) -> (i32, i32) {
    %c0_i32 = arith.constant 0 : i32
    %c0_i32_0 = arith.constant 0 : i32
    %c0_i32_1 = arith.constant 0 : i32
    return %c0_i32, %c0_i32_0 : i32, i32
  }
  func.func @transform_5(%arg0: i32) -> (i32, i32) {
    %c0_i32 = arith.constant 0 : i32
    %c0_i32_0 = arith.constant 0 : i32
    %c0_i32_1 = arith.constant 0 : i32
    return %c0_i32, %c0_i32_0 : i32, i32
  }
  func.func @transform_6(%arg0: i32) -> (i32, i32) {
    %c0_i32 = arith.constant 0 : i32
    %c0_i32_0 = arith.constant 0 : i32
    %c0_i32_1 = arith.constant 0 : i32
    return %c0_i32, %c0_i32_0 : i32, i32
  }
  func.func @transform_7(%arg0: i32) -> (i32, i32) {
    %c0_i32 = arith.constant 0 : i32
    %c0_i32_0 = arith.constant 0 : i32
    return %c0_i32, %arg0 : i32, i32
  }
}

</mosaic_0001>

<llo_original>
// kernel: tpu_custom_call.1
$region0: #{tpu_custom_call.1}
  #allocation0 [shape = 'u32[]', space=smem, size = 0x4, offset = 0x4, fixed_abs, tag = 'smem constant byte address 0x4 - core index']
  #allocation1 [shape = 'u32[144,128]{1,0:T(1,128)}', space=vmem, size = 0x12000, scoped, tag = 'internal scratch']
  #allocation2 [shape = 'f32[1,1]{1,0:T(1,128)S(1)}', space=vmem, size = 0x200, scoped, tag = 'scoped memory for tpu_custom_call.1']
  %s0 = inlined_call_operand.vmem [shape: f32[2,8], index: 0, kind: input, shape index: {}]
  %s1 = inlined_call_operand.vmem [shape: bf16[8,128], index: 1, kind: input, shape index: {}]
  %s2 = inlined_call_operand.vmem [shape: f32[1,128], index: 2, kind: input, shape index: {}]
  %s3 = inlined_call_operand.hbm [shape: bf16[128,128], index: 3, kind: input, shape index: {}]
  %s4 = inlined_call_operand.vmem [shape: f32[1,128], index: 4, kind: input, shape index: {}]
  %s5 = inlined_call_operand.vmem [shape: f32[1,128], index: 5, kind: input, shape index: {}]
  %s6 = inlined_call_operand.<no memory space> [shape: f32[1,1], index: 6, kind: input, shape index: {}]
  %s7 = inlined_call_operand.hbm [shape: f32[1,2], index: 7, kind: output, shape index: {}]
  %s8 = sld [smem:[#allocation0]]
  $region42: #{tpu_custom_call.1} parent=0
    _
  %s10 = ssub.s32 1, %s8
  %s11 = scalar_select 0, %s10, %s8
  %v12 = vstv %s6
  %13 = vst [vmem:[#allocation2] sm:$0x1] %v12
  $region1: #{tpu_custom_call.1} parent=0
    #allocation3 [shape = 'u8[32768]{0}', space=vmem, size = 0x8000, scoped, tag = 'input window, operand 3, single buffered']
    #allocation4 [shape = 's32[1]{0}', space=sflag, size = 0x4, scoped, tag = 'scoped memory for tpu_custom_call.1']
    #allocation5 [shape = 's32[1]{0}', space=sflag, size = 0x4, scoped, tag = 'scoped memory for tpu_custom_call.1']
    #allocation6 [shape = 'u8[512]{0}', space=vmem, size = 0x400, scoped, tag = 'output window, operand 0, single buffered']
    %14 = vsyncpa [#allocation4], 0
    %15 = vsyncpa [#allocation5], 0
    // Predicated region
    $region2: #{tpu_custom_call.1} parent=1 // pred_check
      _
    $region3: #{tpu_custom_call.1} parent=1 // pred_check_branch
      %17 = sbr.rel (0) target = $region5
    $region4: #{tpu_custom_call.1} parent=1 // pred_region
      _
    $region5: #{tpu_custom_call.1} parent=1 // pred_fallthru
      _
    // Predicated region
    $region6: #{tpu_custom_call.1} parent=1 // pred_check
      _
    $region7: #{tpu_custom_call.1} parent=1 // pred_check_branch
      %19 = sbr.rel (0) target = $region9
    $region8: #{tpu_custom_call.1} parent=1 // pred_region
      _
    $region9: #{tpu_custom_call.1} parent=1 // pred_fallthru
      _
    // Predicated region
    $region10: #{tpu_custom_call.1} parent=1 // pred_check
      _
    $region11: #{tpu_custom_call.1} parent=1 // pred_check_branch
      %21 = sbr.rel (0) target = $region13
    $region12: #{tpu_custom_call.1} parent=1 // pred_region
      _
    $region13: #{tpu_custom_call.1} parent=1 // pred_fallthru
      _
    // Predicated region
    $region14: #{tpu_custom_call.1} parent=1 // pred_check
      _
    $region15: #{tpu_custom_call.1} parent=1 // pred_check_branch
      %23 = sbr.rel (0) target = $region17
    $region16: #{tpu_custom_call.1} parent=1 // pred_region
      %s25 = ssub.s32 1024, 1024
      %26 = vsyncadd [#allocation4], %s25
      %s27 = sshll.u32 [#allocation3], 4
      %s28 = int_to_ptr.vmem [resolvable:$true] %s27
      %33 = dma.hbm_to_vmem [thread:$0]  %s3, 1024, %s28, [#allocation4], 64, 64, 4
    $region17: #{tpu_custom_call.1} parent=1 // pred_fallthru
      _
    // Predicated region
    $region18: #{tpu_custom_call.1} parent=1 // pred_check
      _
    $region19: #{tpu_custom_call.1} parent=1 // pred_check_branch
      %35 = sbr.rel (0) target = $region21
    $region20: #{tpu_custom_call.1} parent=1 // pred_region
      _
    $region21: #{tpu_custom_call.1} parent=1 // pred_fallthru
      _
    // Predicated region
    $region22: #{tpu_custom_call.1} parent=1 // pred_check
      _
    $region23: #{tpu_custom_call.1} parent=1 // pred_check_branch
      %37 = sbr.rel (0) target = $region25
    $region24: #{tpu_custom_call.1} parent=1 // pred_region
      _
    $region25: #{tpu_custom_call.1} parent=1 // pred_fallthru
      _
    // Predicated region
    $region26: #{tpu_custom_call.1} parent=1 // pred_check
      _
    $region27: #{tpu_custom_call.1} parent=1 // pred_check_branch
      %39 = sbr.rel (0) target = $region29
    $region28: #{tpu_custom_call.1} parent=1 // pred_region
      _
    $region29: #{tpu_custom_call.1} parent=1 // pred_fallthru
      _
    // Predicated region
    $region30: #{tpu_custom_call.1} parent=1 // pred_check
      _
    $region31: #{tpu_custom_call.1} parent=1 // pred_check_branch
      %41 = sbr.rel (0) target = $region33
    $region32: #{tpu_custom_call.1} parent=1 // pred_region
      %42 = dma.done [#allocation4], 1024
    $region33: #{tpu_custom_call.1} parent=1 // pred_fallthru
      _
    %v44 = vld [vmem:[%s0] sm:$0x3]
    %v45 = vpack.c.bf16 %v44, %v44
    %v46 = vld [vmem:[%s1] sm:$0xf]
    %v47 = vld [vmem:[%s2] sm:$0x1]
    %v49 = vlaneseq
    %v50 = vshrl.u32 %v49, 7
    %v51 = vsub.s32 0, %v50
    %v52 = vrot.slane %v47, %v51
    %vm54 = vcmask 64512
    %v56 = vsel %vm54, %v45, 0
    %vm58 = vcmask 1043456
    %v60 = vsel %vm58, %v46, 0
    %62 = vmatprep.subr.bf16.mxu0 0
    %63 = vmatpush1.bf16.msra.mxu0 %v60
    %64 = vmatprep.subr.bf16.mxu0 0
    %65 = vmatpush1.bf16.msra.mxu0 0
    %66 = vmatprep.subr.bf16.mxu0 0
    %67 = vmatpush1.bf16.msra.mxu0 0
    %68 = vmatprep.subr.bf16.mxu0 0
    %69 = vmatpush1.bf16.msra.mxu0 0
    %70 = vmatprep.subr.bf16.mxu0 0
    %71 = vmatpush1.bf16.msra.mxu0 0
    %72 = vmatprep.subr.bf16.mxu0 0
    %73 = vmatpush1.bf16.msra.mxu0 0
    %74 = vmatprep.subr.bf16.mxu0 0
    %75 = vmatpush1.bf16.msra.mxu0 0
    %76 = vmatprep.subr.bf16.mxu0 0
    %77 = vmatpush1.bf16.msra.mxu0 0
    %78 = vmatprep.subr.bf16.mxu0 0
    %79 = vmatpush1.bf16.msra.mxu0 0
    %80 = vmatprep.subr.bf16.mxu0 0
    %81 = vmatpush1.bf16.msra.mxu0 0
    %82 = vmatprep.subr.bf16.mxu0 0
    %83 = vmatpush1.bf16.msra.mxu0 0
    %84 = vmatprep.subr.bf16.mxu0 0
    %85 = vmatpush1.bf16.msra.mxu0 0
    %86 = vmatprep.subr.bf16.mxu0 0
    %87 = vmatpush1.bf16.msra.mxu0 0
    %88 = vmatprep.subr.bf16.mxu0 0
    %89 = vmatpush1.bf16.msra.mxu0 0
    %90 = vmatprep.subr.bf16.mxu0 0
    %91 = vmatpush1.bf16.msra.mxu0 0
    %92 = vmatprep.subr.bf16.mxu0 0
    %93 = vmatpush1.bf16.msra.mxu0 0
    %94 = vmatprep.mubr.bf16.mxu0 0
    %95 = vmatmul.mubr.bf16.gmra.mrb[0].mxu0 %v56
    %v96 = vpop.f32.mrb[0].mxu0
    %v97 = vadd.f32 %v52, %v96
    %v98 = vpop.f32.mrb[0].mxu0
    %v99 = vpop.f32.mrb[0].mxu0
    %v100 = vpop.f32.mrb[0].mxu0
    %101 = vdwg.mxu0
    %v102 = vmax.f32 %v97, 0.0
    %v103 = vpack.c.bf16 %v102, %v102
    %v104 = vld [vmem:[#allocation3] sm:$0xf]
    %v105 = vld [vmem:[#allocation3 + $0x4] sm:$0xf]
    %v106 = vld [vmem:[#allocation3 + $0x8] sm:$0xf]
    %v107 = vld [vmem:[#allocation3 + $0xc] sm:$0xf]
    %v108 = vld [vmem:[#allocation3 + $0x10] sm:$0xf]
    %v109 = vld [vmem:[#allocation3 + $0x14] sm:$0xf]
    %v110 = vld [vmem:[#allocation3 + $0x18] sm:$0xf]
    %v111 = vld [vmem:[#allocation3 + $0x1c] sm:$0xf]
    %v112 = vld [vmem:[#allocation3 + $0x20] sm:$0xf]
    %v113 = vld [vmem:[#allocation3 + $0x24] sm:$0xf]
    %v114 = vld [vmem:[#allocation3 + $0x28] sm:$0xf]
    %v115 = vld [vmem:[#allocation3 + $0x2c] sm:$0xf]
    %v116 = vld [vmem:[#allocation3 + $0x30] sm:$0xf]
    %v117 = vld [vmem:[#allocation3 + $0x34] sm:$0xf]
    %v118 = vld [vmem:[#allocation3 + $0x38] sm:$0xf]
    %v119 = vld [vmem:[#allocation3 + $0x3c] sm:$0xf]
    %v120 = vld [vmem:[%s4] sm:$0x1]
    %v122 = vlaneseq
    %v123 = vshrl.u32 %v122, 7
    %v124 = vsub.s32 0, %v123
    %v125 = vrot.slane %v120, %v124
    %v143 = vunpack.c.l.b16 %v104
    %v144 = vunpack.c.l.b16 %v105
    %v145 = vunpack.c.l.b16 %v106
    %v146 = vunpack.c.l.b16 %v107
    %v147 = vunpack.c.l.b16 %v108
    %v148 = vunpack.c.l.b16 %v109
    %v149 = vunpack.c.l.b16 %v110
    %v150 = vunpack.c.l.b16 %v111
    %v151 = vunpack.c.l.b16 %v112
    %v152 = vunpack.c.l.b16 %v113
    %v153 = vunpack.c.l.b16 %v114
    %v154 = vunpack.c.l.b16 %v115
    %v155 = vunpack.c.l.b16 %v116
    %v156 = vunpack.c.l.b16 %v117
    %v157 = vunpack.c.l.b16 %v118
    %v158 = vunpack.c.l.b16 %v119
    %v159 = vpack.c.b16 %v144, %v143
    %v160 = vpack.c.b16 %v146, %v145
    %v161 = vpack.c.b16 %v148, %v147
    %v162 = vpack.c.b16 %v150, %v149
    %v163 = vpack.c.b16 %v152, %v151
    %v164 = vpack.c.b16 %v154, %v153
    %v165 = vpack.c.b16 %v156, %v155
    %v166 = vpack.c.b16 %v158, %v157
    %175 = vmatprep.subr.bf16.mxu0 0
    %176 = vmatpush1.bf16.msra.mxu0 %v159
    %177 = vmatprep.subr.bf16.mxu0 0
    %178 = vmatpush1.bf16.msra.mxu0 %v160
    %179 = vmatprep.subr.bf16.mxu0 0
    %180 = vmatpush1.bf16.msra.mxu0 %v161
    %181 = vmatprep.subr.bf16.mxu0 0
    %182 = vmatpush1.bf16.msra.mxu0 %v162
    %183 = vmatprep.subr.bf16.mxu0 0
    %184 = vmatpush1.bf16.msra.mxu0 %v163
    %185 = vmatprep.subr.bf16.mxu0 0
    %186 = vmatpush1.bf16.msra.mxu0 %v164
    %187 = vmatprep.subr.bf16.mxu0 0
    %188 = vmatpush1.bf16.msra.mxu0 %v165
    %189 = vmatprep.subr.bf16.mxu0 0
    %190 = vmatpush1.bf16.msra.mxu0 %v166
    %191 = vmatprep.subr.bf16.mxu0 0
    %192 = vmatpush1.bf16.msra.mxu0 0
    %193 = vmatprep.subr.bf16.mxu0 0
    %194 = vmatpush1.bf16.msra.mxu0 0
    %195 = vmatprep.subr.bf16.mxu0 0
    %196 = vmatpush1.bf16.msra.mxu0 0
    %197 = vmatprep.subr.bf16.mxu0 0
    %198 = vmatpush1.bf16.msra.mxu0 0
    %199 = vmatprep.subr.bf16.mxu0 0
    %200 = vmatpush1.bf16.msra.mxu0 0
    %201 = vmatprep.subr.bf16.mxu0 0
    %202 = vmatpush1.bf16.msra.mxu0 0
    %203 = vmatprep.subr.bf16.mxu0 0
    %204 = vmatpush1.bf16.msra.mxu0 0
    %205 = vmatprep.subr.bf16.mxu0 0
    %206 = vmatpush1.bf16.msra.mxu0 0
    %207 = vmatprep.mubr.bf16.mxu0 0
    %208 = vmatmul.mubr.bf16.gmra.mrb[0].mxu0 %v103
    %v209 = vpop.f32.mrb[0].mxu0
    %v210 = vadd.f32 %v125, %v209
    %v211 = vpop.f32.mrb[0].mxu0
    %v212 = vpop.f32.mrb[0].mxu0
    %v213 = vpop.f32.mrb[0].mxu0
    %214 = vdwg.mxu0
    %v215 = vmax.f32 %v210, 0.0
    %v216 = vld [vmem:[%s5] sm:$0x1]
    %v217 = vld [vmem:[#allocation2] sm:$0x1]
    %219 = vset.pattern.permute.xlu0 0
    %220 = vperm.xlu0 %219, %v217
    %v221 = vpop.permute.xlu0 %220
    %v223 = vlaneseq
    %v224 = vshrl.u32 %v223, 7
    %v225 = vsub.s32 0, %v224
    %v226 = vrot.slane %v221, %v225
    %227 = vmatprep.subr.mxu0 0.0
    %228 = vmatpush1.xpose.msra.mxu0 %v215
    %229 = vmatprep.subr.mxu0 0.0
    %230 = vmatpush1.xpose.msra.mxu0 0.0
    %231 = vmatprep.subr.mxu0 0.0
    %232 = vmatpush1.xpose.msra.mxu0 0.0
    %233 = vmatprep.subr.mxu0 0.0
    %234 = vmatpush1.xpose.msra.mxu0 0.0
    %235 = vmatprep.subr.mxu0 0.0
    %236 = vmatpush1.xpose.msra.mxu0 0.0
    %237 = vmatprep.subr.mxu0 0.0
    %238 = vmatpush1.xpose.msra.mxu0 0.0
    %239 = vmatprep.subr.mxu0 0.0
    %240 = vmatpush1.xpose.msra.mxu0 0.0
    %241 = vmatprep.subr.mxu0 0.0
    %242 = vmatpush1.xpose.msra.mxu0 0.0
    %243 = vmatprep.subr.mxu0 0.0
    %244 = vmatpush1.xpose.msra.mxu0 0.0
    %245 = vmatprep.subr.mxu0 0.0
    %246 = vmatpush1.xpose.msra.mxu0 0.0
    %247 = vmatprep.subr.mxu0 0.0
    %248 = vmatpush1.xpose.msra.mxu0 0.0
    %249 = vmatprep.subr.mxu0 0.0
    %250 = vmatpush1.xpose.msra.mxu0 0.0
    %251 = vmatprep.subr.mxu0 0.0
    %252 = vmatpush1.xpose.msra.mxu0 0.0
    %253 = vmatprep.subr.mxu0 0.0
    %254 = vmatpush1.xpose.msra.mxu0 0.0
    %255 = vmatprep.subr.mxu0 0.0
    %256 = vmatpush1.xpose.msra.mxu0 0.0
    %257 = vmatprep.subr.mxu0 0.0
    %258 = vmatpush1.xpose.msra.mxu0 0.0
    %259 = vmatprep.subr.mxu0 0.0
    %260 = vmatpush1.xpose.msra.mxu0 0.0
    %261 = vmatprep.subr.mxu0 0.0
    %262 = vmatpush1.xpose.msra.mxu0 0.0
    %263 = vmatprep.subr.mxu0 0.0
    %264 = vmatpush1.xpose.msra.mxu0 0.0
    %265 = vmatprep.subr.mxu0 0.0
    %266 = vmatpush1.xpose.msra.mxu0 0.0
    %267 = vmatprep.subr.mxu0 0.0
    %268 = vmatpush1.xpose.msra.mxu0 0.0
    %269 = vmatprep.subr.mxu0 0.0
    %270 = vmatpush1.xpose.msra.mxu0 0.0
    %271 = vmatprep.subr.mxu0 0.0
    %272 = vmatpush1.xpose.msra.mxu0 0.0
    %273 = vmatprep.subr.mxu0 0.0
    %274 = vmatpush1.xpose.msra.mxu0 0.0
    %275 = vmatprep.subr.mxu0 0.0
    %276 = vmatpush1.xpose.msra.mxu0 0.0
    %277 = vmatprep.subr.mxu0 0.0
    %278 = vmatpush1.xpose.msra.mxu0 0.0
    %279 = vmatprep.subr.mxu0 0.0
    %280 = vmatpush1.xpose.msra.mxu0 0.0
    %281 = vmatprep.subr.mxu0 0.0
    %282 = vmatpush1.xpose.msra.mxu0 0.0
    %283 = vmatprep.subr.mxu0 0.0
    %284 = vmatpush1.xpose.msra.mxu0 0.0
    %285 = vmatprep.subr.mxu0 0.0
    %286 = vmatpush1.xpose.msra.mxu0 0.0
    %287 = vmatprep.subr.mxu0 0.0
    %288 = vmatpush1.xpose.msra.mxu0 0.0
    %289 = vmatprep.subr.mxu0 0.0
    %290 = vmatpush1.xpose.msra.mxu0 0.0
    %291 = vmatprep.mubr.f32.mxu0 0.0
    %292 = vmatmul.mubr.f32.gmra.mrb[0].mxu0 %v216
    %v293 = vpop.f32.mrb[0].mxu0
    %v294 = vadd.f32 %v226, %v293
    %v295 = vpop.f32.mrb[0].mxu0
    %296 = vdwg.mxu0
    %vm297 = vcmask 8192
    %298 = vst.msk [vmem:[#allocation6] sm:$0x1] %vm297, %v294
    // Predicated region
    $region34: #{tpu_custom_call.1} parent=1 // pred_check
      _
    $region35: #{tpu_custom_call.1} parent=1 // pred_check_branch
      %300 = sbr.rel (0) target = $region37
    $region36: #{tpu_custom_call.1} parent=1 // pred_region
      %s302 = ssub.s32 16, 16
      %303 = vsyncadd [#allocation5], %s302
      %s305 = sshll.u32 [#allocation6], 4
      %s306 = int_to_ptr.vmem [resolvable:$true] %s305
      %308 = dma.vmem_to_hbm [thread:$0]  %s306, 16, %s7, [#allocation5]
    $region37: #{tpu_custom_call.1} parent=1 // pred_fallthru
      _
    // Predicated region
    $region38: #{tpu_custom_call.1} parent=1 // pred_check
      _
    $region39: #{tpu_custom_call.1} parent=1 // pred_check_branch
      %310 = sbr.rel (0) target = $region41
    $region40: #{tpu_custom_call.1} parent=1 // pred_region
      %311 = dma.done [#allocation5], 16
    $region41: #{tpu_custom_call.1} parent=1 // pred_fallthru
      _
    %312 = vsyncpa [#allocation4], 1
    %313 = vsyncpa [#allocation5], 1

</llo_original>
